<compile_context>
chip_gen: v7x
topology: tpu7x:2x2x1
jax: 0.10.0
libtpu: 0.0.40
codegen_flags: <defaults>
</compile_context>

<pallas_src>
import functools

import jax
import jax.numpy as jnp
from jax.experimental import pallas as pl
from jax.experimental.pallas import tpu as pltpu

EPS = 1e-5


def _round_up(a, m):
    return (a + m - 1) // m * m


def adaln_kernel(x_ref, cond_ref, gamma_ref, wcat_ref, b1_ref, o_ref, *, act, act_off):
    f32 = jnp.float32
    x = x_ref[...].astype(f32)        # (TN, dim)      -- unpadded feature dims
    c = cond_ref[...].astype(f32)     # (TN, cond_dim)

    # --- LayerNorm(x), elementwise_affine=False (biased variance, eps=1e-5) ---
    inv_dim = 1.0 / x.shape[-1]
    mu_x = jnp.sum(x, axis=-1, keepdims=True) * inv_dim
    xc = x - mu_x
    var_x = jnp.sum(xc * xc, axis=-1, keepdims=True) * inv_dim
    xn = xc * jax.lax.rsqrt(var_x + EPS)

    # --- LayerNorm(cond), weight=gamma, bias=None ---
    inv_cd = 1.0 / c.shape[-1]
    mu_c = jnp.sum(c, axis=-1, keepdims=True) * inv_cd
    cc = c - mu_c
    var_c = jnp.sum(cc * cc, axis=-1, keepdims=True) * inv_cd
    cn = cc * jax.lax.rsqrt(var_c + EPS) * gamma_ref[...].astype(f32)

    # --- fused conditional projection: one MXU pass over [W1^T | W2^T] ---
    w = wcat_ref[...]                                        # (cond_dim, 2*dim)
    proj = jnp.dot(cn.astype(w.dtype), w, preferred_element_type=jnp.float32)
    d = proj.shape[-1] // 2
    scale = act(proj[:, :d] + b1_ref[...].astype(f32)) + act_off
    shift = proj[:, d:]

    o_ref[...] = (scale * xn + shift).astype(o_ref.dtype)


def adaln(x, cond, gamma, w1t, b1, w2t, *, activation="sigmoid",
          tile_n=512, mxu_dtype=jnp.bfloat16):
    """x: (N, dim), cond: (N, cond_dim); gamma: (1, cond_dim) or (cond_dim,);
    w1t, w2t: (cond_dim, dim) (pre-transposed Linear weights); b1: (1, dim) or (dim,).

    mxu_dtype=jnp.bfloat16 (default) ships the fused weight bf16 and casts cn in-kernel
    (f32 accumulation); expect ~1e-2 relative error vs an all-f32 reference.
    Pass mxu_dtype=None for exact f32 MXU operands.
    """
    N, dim = x.shape
    Nc, cond_dim = cond.shape
    assert Nc == N, "x and cond must have the same number of rows"

    activations = {"sigmoid": (jax.nn.sigmoid, 0.0), "tanh": (jnp.tanh, 1.0)}
    act, act_off = activations[activation]
    f32 = jnp.float32

    # Small parameters only (no activation padding, no output slice).
    gamma2 = jnp.reshape(gamma, (1, cond_dim)).astype(f32)
    b1_2 = jnp.reshape(b1, (1, dim)).astype(f32)
    wcat = jnp.concatenate([w1t, w2t], axis=1)               # (cond_dim, 2*dim)
    if mxu_dtype is not None:
        wcat = wcat.astype(mxu_dtype)
    # TODO(synk): for very large dim/cond_dim (fused weight >~16 MiB) tile the output dim
    # with a second grid axis instead of keeping [W1^T|W2^T] fully resident in VMEM.

    itemsize = lambda a: jnp.dtype(a.dtype).itemsize
    row_align = 8 if min(itemsize(x), itemsize(cond)) >= 4 else 16

    # Guarantee >=2 grid steps (when N allows) so ("parallel",) can use both v7x TensorCores.
    max_tile = max(row_align, _round_up(pl.cdiv(N, 2), row_align))
    tile_n = max(row_align, min(_round_up(tile_n, row_align), max_tile))

    # VMEM budget: ~75% of physical per-core VMEM (≈48 MiB v7x, ≈96 MiB v5e/v6e).
    try:
        vmem_cap = int(pltpu.get_tpu_info().vmem_capacity_bytes)
    except Exception:
        vmem_cap = 64 << 20
    vmem_budget = (vmem_cap * 3) // 4

    isz_x, isz_c, isz_w = itemsize(x), itemsize(cond), itemsize(wcat)
    # Worst-case (double-buffered) resident params, in case single-buffering is ignored.
    param_bytes = 2 * (cond_dim * 2 * dim * isz_w + (cond_dim + dim) * 4)

    def vmem_need(tn):
        tiles = 2 * tn * (dim * isz_x + cond_dim * isz_c + dim * isz_x)  # double-buffered I/O
        temps = tn * (8 * dim + 4 * cond_dim) * 4                        # in-kernel f32 working set
        return tiles + temps + param_bytes + (2 << 20)

    while tile_n > row_align and vmem_need(tile_n) > vmem_budget:
        tile_n = max(row_align, _round_up(tile_n // 2, row_align))

    grid = (pl.cdiv(N, tile_n),)
    vmem_limit = int(max(32 << 20, vmem_budget))

    kernel = functools.partial(adaln_kernel, act=act, act_off=act_off)

    def make_call(single_buffer_params):
        if single_buffer_params:
            # Grid-invariant operands: never re-DMA'd; keep only one VMEM buffer.
            cspec = lambda s: pl.BlockSpec(s, lambda i: (0, 0), pipeline_mode=pl.Buffered(1))
        else:
            cspec = lambda s: pl.BlockSpec(s, lambda i: (0, 0))
        return pl.pallas_call(
            kernel,
            out_shape=jax.ShapeDtypeStruct((N, dim), x.dtype),
            grid_spec=pltpu.PrefetchScalarGridSpec(
                num_scalar_prefetch=0,
                grid=grid,
                in_specs=[
                    pl.BlockSpec((tile_n, dim), lambda i: (i, 0)),       # x row tile
                    pl.BlockSpec((tile_n, cond_dim), lambda i: (i, 0)),  # cond row tile
                    cspec((1, cond_dim)),                                # gamma (resident)
                    cspec((cond_dim, 2 * dim)),                          # [W1^T | W2^T] (resident)
                    cspec((1, dim)),                                     # b1 (resident)
                ],
                out_specs=pl.BlockSpec((tile_n, dim), lambda i: (i, 0)),
            ),
            compiler_params=pltpu.CompilerParams(
                dimension_semantics=("parallel",),
                vmem_limit_bytes=vmem_limit,
            ),
        )

    try:
        return make_call(True)(x, cond, gamma2, wcat, b1_2)
    except Exception:
        # Compatibility fallback if this jax version rejects pipeline_mode on top-level specs.
        return make_call(False)(x, cond, gamma2, wcat, b1_2)


def adaln_ref(x, cond, gamma, w1t, b1, w2t, activation="sigmoid", mxu_dtype=None):
    """Pure-JAX reference matching the PyTorch module (f32 LN statistics)."""
    activations = {"sigmoid": (jax.nn.sigmoid, 0.0), "tanh": (jnp.tanh, 1.0)}
    act, act_off = activations[activation]
    x = x.astype(jnp.float32)
    cond = cond.astype(jnp.float32)
    xn = (x - x.mean(-1, keepdims=True)) * jax.lax.rsqrt(x.var(-1, keepdims=True) + EPS)
    cn = (cond - cond.mean(-1, keepdims=True)) * jax.lax.rsqrt(cond.var(-1, keepdims=True) + EPS)
    cn = cn * jnp.reshape(gamma, (1, -1))
    if mxu_dtype is not None:
        cn_m, w1, w2 = cn.astype(mxu_dtype), w1t.astype(mxu_dtype), w2t.astype(mxu_dtype)
    else:
        cn_m, w1, w2 = cn, w1t, w2t
    scale = act(jnp.dot(cn_m, w1, preferred_element_type=jnp.float32)
                + jnp.reshape(b1, (1, -1))) + act_off
    shift = jnp.dot(cn_m, w2, preferred_element_type=jnp.float32)
    return scale * xn + shift


if __name__ == "__main__":
    N, dim, cond_dim = 16, 32, 24

    key = jax.random.PRNGKey(0)
    kx, kc, kg, kw1, kb1, kw2 = jax.random.split(key, 6)

    x = jax.random.normal(kx, (N, dim), jnp.float32)
    cond = jax.random.normal(kc, (N, cond_dim), jnp.float32)

    # Parameters (shapes follow the module __init__; gamma perturbed from its init of ones
    # so the cond_norm affine path is actually exercised).
    gamma = 1.0 + 0.05 * jax.random.normal(kg, (1, cond_dim), jnp.float32)   # cond_norm.weight
    bound = 1.0 / float(cond_dim) ** 0.5
    w1t = jax.random.uniform(kw1, (cond_dim, dim), jnp.float32, -bound, bound)  # Linear W^T
    b1 = jax.random.uniform(kb1, (1, dim), jnp.float32, -bound, bound)          # Linear bias
    w2t = jax.random.uniform(kw2, (cond_dim, dim), jnp.float32, -bound, bound)  # Linear (no bias) W^T

    ref = adaln_ref(x, cond, gamma, w1t, b1, w2t, activation="sigmoid")

    # Exact-precision path (f32 MXU operands) — tight check vs the reference.
    out_f32 = jax.block_until_ready(
        adaln(x, cond, gamma, w1t, b1, w2t, activation="sigmoid", mxu_dtype=None))
    assert out_f32.shape == (N, dim)
    assert jnp.allclose(out_f32, ref, atol=1e-5, rtol=1e-5), "f32 path mismatch vs reference"

    # Default fast path (bf16 MXU weights, f32 accumulation) — loose check vs the f32 reference.
    out_bf16 = jax.block_until_ready(
        adaln(x, cond, gamma, w1t, b1, w2t, activation="sigmoid"))
    assert out_bf16.shape == (N, dim)
    assert jnp.allclose(out_bf16, ref, atol=5e-2, rtol=5e-2), "bf16 path mismatch vs reference"

    print("KERNEL_OK")
</pallas_src>

<mosaic_0001>
module attributes {stable_mosaic.version = 11 : i64} {
  func.func @adaln_kernel(%arg0: i32, %arg1: memref<8x32xf32, #tpu.memory_space<vmem>>, %arg2: memref<8x24xf32, #tpu.memory_space<vmem>>, %arg3: memref<1x24xf32, #tpu.memory_space<vmem>>, %arg4: memref<24x64xf32, #tpu.memory_space<vmem>>, %arg5: memref<1x32xf32, #tpu.memory_space<vmem>>, %arg6: memref<8x32xf32, #tpu.memory_space<vmem>>) attributes {dimension_semantics = [#tpu.dimension_semantics<parallel>], iteration_bounds = array<i64: 2>, scalar_prefetch = 0 : i64, scratch_operands = 0 : i64, tpu.core_type = #tpu.core_type<tc>, window_params = [{transform_indices = @transform_0, window_bounds = array<i64: 8, 32>}, {transform_indices = @transform_1, window_bounds = array<i64: 8, 24>}, {pipeline_mode = #tpu.pipeline_mode<synchronous>, transform_indices = @transform_2, window_bounds = array<i64: 1, 24>}, {pipeline_mode = #tpu.pipeline_mode<synchronous>, transform_indices = @transform_3, window_bounds = array<i64: 24, 64>}, {pipeline_mode = #tpu.pipeline_mode<synchronous>, transform_indices = @transform_4, window_bounds = array<i64: 1, 32>}, {transform_indices = @transform_5, window_bounds = array<i64: 8, 32>}]} {
    %c0 = arith.constant 0 : index
    %c0_0 = arith.constant 0 : index
    %0 = vector.load %arg1[%c0, %c0_0] : memref<8x32xf32, #tpu.memory_space<vmem>>, vector<8x32xf32>
    %c0_1 = arith.constant 0 : index
    %c0_2 = arith.constant 0 : index
    %1 = vector.load %arg2[%c0_1, %c0_2] : memref<8x24xf32, #tpu.memory_space<vmem>>, vector<8x24xf32>
    %cst = arith.constant dense<0.000000e+00> : vector<8xf32>
    %2 = vector.multi_reduction <add>, %0, %cst [1] : vector<8x32xf32> to vector<8xf32>
    %3 = vector.shape_cast %2 : vector<8xf32> to vector<8x1xf32>
    %cst_3 = arith.constant 3.125000e-02 : f32
    %4 = vector.broadcast %cst_3 : f32 to vector<8x1xf32>
    %5 = arith.mulf %3, %4 : vector<8x1xf32>
    %6 = vector.broadcast %5 : vector<8x1xf32> to vector<8x32xf32>
    %7 = arith.subf %0, %6 : vector<8x32xf32>
    %8 = arith.mulf %7, %7 : vector<8x32xf32>
    %cst_4 = arith.constant dense<0.000000e+00> : vector<8xf32>
    %9 = vector.multi_reduction <add>, %8, %cst_4 [1] : vector<8x32xf32> to vector<8xf32>
    %10 = vector.shape_cast %9 : vector<8xf32> to vector<8x1xf32>
    %cst_5 = arith.constant 3.125000e-02 : f32
    %11 = vector.broadcast %cst_5 : f32 to vector<8x1xf32>
    %12 = arith.mulf %10, %11 : vector<8x1xf32>
    %cst_6 = arith.constant 9.99999974E-6 : f32
    %13 = vector.broadcast %cst_6 : f32 to vector<8x1xf32>
    %14 = arith.addf %12, %13 : vector<8x1xf32>
    %15 = math.rsqrt %14 : vector<8x1xf32>
    %16 = vector.broadcast %15 : vector<8x1xf32> to vector<8x32xf32>
    %17 = arith.mulf %7, %16 : vector<8x32xf32>
    %cst_7 = arith.constant dense<0.000000e+00> : vector<8xf32>
    %18 = vector.multi_reduction <add>, %1, %cst_7 [1] : vector<8x24xf32> to vector<8xf32>
    %19 = vector.shape_cast %18 : vector<8xf32> to vector<8x1xf32>
    %cst_8 = arith.constant 0.0416666679 : f32
    %20 = vector.broadcast %cst_8 : f32 to vector<8x1xf32>
    %21 = arith.mulf %19, %20 : vector<8x1xf32>
    %22 = vector.broadcast %21 : vector<8x1xf32> to vector<8x24xf32>
    %23 = arith.subf %1, %22 : vector<8x24xf32>
    %24 = arith.mulf %23, %23 : vector<8x24xf32>
    %cst_9 = arith.constant dense<0.000000e+00> : vector<8xf32>
    %25 = vector.multi_reduction <add>, %24, %cst_9 [1] : vector<8x24xf32> to vector<8xf32>
    %26 = vector.shape_cast %25 : vector<8xf32> to vector<8x1xf32>
    %cst_10 = arith.constant 0.0416666679 : f32
    %27 = vector.broadcast %cst_10 : f32 to vector<8x1xf32>
    %28 = arith.mulf %26, %27 : vector<8x1xf32>
    %cst_11 = arith.constant 9.99999974E-6 : f32
    %29 = vector.broadcast %cst_11 : f32 to vector<8x1xf32>
    %30 = arith.addf %28, %29 : vector<8x1xf32>
    %31 = math.rsqrt %30 : vector<8x1xf32>
    %32 = vector.broadcast %31 : vector<8x1xf32> to vector<8x24xf32>
    %33 = arith.mulf %23, %32 : vector<8x24xf32>
    %c0_12 = arith.constant 0 : index
    %c0_13 = arith.constant 0 : index
    %34 = vector.load %arg3[%c0_12, %c0_13] : memref<1x24xf32, #tpu.memory_space<vmem>>, vector<1x24xf32>
    %35 = vector.broadcast %34 : vector<1x24xf32> to vector<8x24xf32>
    %36 = arith.mulf %33, %35 : vector<8x24xf32>
    %c0_14 = arith.constant 0 : index
    %c0_15 = arith.constant 0 : index
    %37 = vector.load %arg4[%c0_14, %c0_15] : memref<24x64xf32, #tpu.memory_space<vmem>>, vector<24x64xf32>
    %cst_16 = arith.constant dense<0.000000e+00> : vector<8x64xf32>
    %38 = tpu.matmul %36, %37, %cst_16 {dimension_numbers = #tpu.dot_dimension_numbers<[1], [0], [0], [1], [0, 0, 1, 1], [], []>} : vector<8x24xf32>, vector<24x64xf32>, vector<8x64xf32> -> vector<8x64xf32>
    %39 = vector.extract_strided_slice %38 {offsets = [0, 0], sizes = [8, 32], strides = [1, 1]} : vector<8x64xf32> to vector<8x32xf32>
    %c0_17 = arith.constant 0 : index
    %c0_18 = arith.constant 0 : index
    %40 = vector.load %arg5[%c0_17, %c0_18] : memref<1x32xf32, #tpu.memory_space<vmem>>, vector<1x32xf32>
    %41 = vector.broadcast %40 : vector<1x32xf32> to vector<8x32xf32>
    %42 = arith.addf %39, %41 : vector<8x32xf32>
    %43 = arith.negf %42 : vector<8x32xf32>
    %44 = math.exp %43 : vector<8x32xf32>
    %cst_19 = arith.constant 1.000000e+00 : f32
    %45 = vector.broadcast %cst_19 : f32 to vector<8x32xf32>
    %46 = arith.addf %45, %44 : vector<8x32xf32>
    %47 = arith.divf %45, %46 : vector<8x32xf32>
    %cst_20 = arith.constant 0.000000e+00 : f32
    %48 = vector.broadcast %cst_20 : f32 to vector<8x32xf32>
    %49 = arith.addf %47, %48 : vector<8x32xf32>
    %50 = vector.extract_strided_slice %38 {offsets = [0, 32], sizes = [8, 32], strides = [1, 1]} : vector<8x64xf32> to vector<8x32xf32>
    %51 = arith.mulf %49, %17 : vector<8x32xf32>
    %52 = arith.addf %51, %50 : vector<8x32xf32>
    %c0_21 = arith.constant 0 : index
    %c0_22 = arith.constant 0 : index
    %53 = vector.load %arg6[%c0_21, %c0_22] : memref<8x32xf32, #tpu.memory_space<vmem>>, vector<8x32xf32>
    tpu.vector_store %arg6[%c0_21, %c0_22], %52 {strides = array<i32>} : memref<8x32xf32, #tpu.memory_space<vmem>>, vector<8x32xf32>,
    return
  }
  func.func @transform_0(%arg0: i32) -> (i32, i32) {
    %c0_i32 = arith.constant 0 : i32
    %c0_i32_0 = arith.constant 0 : i32
    return %arg0, %c0_i32 : i32, i32
  }
  func.func @transform_1(%arg0: i32) -> (i32, i32) {
    %c0_i32 = arith.constant 0 : i32
    %c0_i32_0 = arith.constant 0 : i32
    return %arg0, %c0_i32 : i32, i32
  }
  func.func @transform_2(%arg0: i32) -> (i32, i32) {
    %c0_i32 = arith.constant 0 : i32
    %c0_i32_0 = arith.constant 0 : i32
    %c0_i32_1 = arith.constant 0 : i32
    return %c0_i32, %c0_i32_0 : i32, i32
  }
  func.func @transform_3(%arg0: i32) -> (i32, i32) {
    %c0_i32 = arith.constant 0 : i32
    %c0_i32_0 = arith.constant 0 : i32
    %c0_i32_1 = arith.constant 0 : i32
    return %c0_i32, %c0_i32_0 : i32, i32
  }
  func.func @transform_4(%arg0: i32) -> (i32, i32) {
    %c0_i32 = arith.constant 0 : i32
    %c0_i32_0 = arith.constant 0 : i32
    %c0_i32_1 = arith.constant 0 : i32
    return %c0_i32, %c0_i32_0 : i32, i32
  }
  func.func @transform_5(%arg0: i32) -> (i32, i32) {
    %c0_i32 = arith.constant 0 : i32
    %c0_i32_0 = arith.constant 0 : i32
    return %arg0, %c0_i32 : i32, i32
  }
}

module attributes {stable_mosaic.version = 11 : i64} {
  func.func @adaln_kernel(%arg0: i32, %arg1: memref<8x32xf32, #tpu.memory_space<vmem>>, %arg2: memref<8x24xf32, #tpu.memory_space<vmem>>, %arg3: memref<1x24xf32, #tpu.memory_space<vmem>>, %arg4: memref<24x64xf32, #tpu.memory_space<vmem>>, %arg5: memref<1x32xf32, #tpu.memory_space<vmem>>, %arg6: memref<8x32xf32, #tpu.memory_space<vmem>>) attributes {dimension_semantics = [#tpu.dimension_semantics<parallel>], iteration_bounds = array<i64: 2>, scalar_prefetch = 0 : i64, scratch_operands = 0 : i64, tpu.core_type = #tpu.core_type<tc>, window_params = [{transform_indices = @transform_0, window_bounds = array<i64: 8, 32>}, {transform_indices = @transform_1, window_bounds = array<i64: 8, 24>}, {pipeline_mode = #tpu.pipeline_mode<synchronous>, transform_indices = @transform_2, window_bounds = array<i64: 1, 24>}, {pipeline_mode = #tpu.pipeline_mode<synchronous>, transform_indices = @transform_3, window_bounds = array<i64: 24, 64>}, {pipeline_mode = #tpu.pipeline_mode<synchronous>, transform_indices = @transform_4, window_bounds = array<i64: 1, 32>}, {transform_indices = @transform_5, window_bounds = array<i64: 8, 32>}]} {
    %c0 = arith.constant 0 : index
    %c0_0 = arith.constant 0 : index
    %0 = vector.load %arg1[%c0, %c0_0] : memref<8x32xf32, #tpu.memory_space<vmem>>, vector<8x32xf32>
    %c0_1 = arith.constant 0 : index
    %c0_2 = arith.constant 0 : index
    %1 = vector.load %arg2[%c0_1, %c0_2] : memref<8x24xf32, #tpu.memory_space<vmem>>, vector<8x24xf32>
    %cst = arith.constant dense<0.000000e+00> : vector<8xf32>
    %2 = vector.multi_reduction <add>, %0, %cst [1] : vector<8x32xf32> to vector<8xf32>
    %3 = vector.shape_cast %2 : vector<8xf32> to vector<8x1xf32>
    %cst_3 = arith.constant 3.125000e-02 : f32
    %4 = vector.broadcast %cst_3 : f32 to vector<8x1xf32>
    %5 = arith.mulf %3, %4 : vector<8x1xf32>
    %6 = vector.broadcast %5 : vector<8x1xf32> to vector<8x32xf32>
    %7 = arith.subf %0, %6 : vector<8x32xf32>
    %8 = arith.mulf %7, %7 : vector<8x32xf32>
    %cst_4 = arith.constant dense<0.000000e+00> : vector<8xf32>
    %9 = vector.multi_reduction <add>, %8, %cst_4 [1] : vector<8x32xf32> to vector<8xf32>
    %10 = vector.shape_cast %9 : vector<8xf32> to vector<8x1xf32>
    %cst_5 = arith.constant 3.125000e-02 : f32
    %11 = vector.broadcast %cst_5 : f32 to vector<8x1xf32>
    %12 = arith.mulf %10, %11 : vector<8x1xf32>
    %cst_6 = arith.constant 9.99999974E-6 : f32
    %13 = vector.broadcast %cst_6 : f32 to vector<8x1xf32>
    %14 = arith.addf %12, %13 : vector<8x1xf32>
    %15 = math.rsqrt %14 : vector<8x1xf32>
    %16 = vector.broadcast %15 : vector<8x1xf32> to vector<8x32xf32>
    %17 = arith.mulf %7, %16 : vector<8x32xf32>
    %cst_7 = arith.constant dense<0.000000e+00> : vector<8xf32>
    %18 = vector.multi_reduction <add>, %1, %cst_7 [1] : vector<8x24xf32> to vector<8xf32>
    %19 = vector.shape_cast %18 : vector<8xf32> to vector<8x1xf32>
    %cst_8 = arith.constant 0.0416666679 : f32
    %20 = vector.broadcast %cst_8 : f32 to vector<8x1xf32>
    %21 = arith.mulf %19, %20 : vector<8x1xf32>
    %22 = vector.broadcast %21 : vector<8x1xf32> to vector<8x24xf32>
    %23 = arith.subf %1, %22 : vector<8x24xf32>
    %24 = arith.mulf %23, %23 : vector<8x24xf32>
    %cst_9 = arith.constant dense<0.000000e+00> : vector<8xf32>
    %25 = vector.multi_reduction <add>, %24, %cst_9 [1] : vector<8x24xf32> to vector<8xf32>
    %26 = vector.shape_cast %25 : vector<8xf32> to vector<8x1xf32>
    %cst_10 = arith.constant 0.0416666679 : f32
    %27 = vector.broadcast %cst_10 : f32 to vector<8x1xf32>
    %28 = arith.mulf %26, %27 : vector<8x1xf32>
    %cst_11 = arith.constant 9.99999974E-6 : f32
    %29 = vector.broadcast %cst_11 : f32 to vector<8x1xf32>
    %30 = arith.addf %28, %29 : vector<8x1xf32>
    %31 = math.rsqrt %30 : vector<8x1xf32>
    %32 = vector.broadcast %31 : vector<8x1xf32> to vector<8x24xf32>
    %33 = arith.mulf %23, %32 : vector<8x24xf32>
    %c0_12 = arith.constant 0 : index
    %c0_13 = arith.constant 0 : index
    %34 = vector.load %arg3[%c0_12, %c0_13] : memref<1x24xf32, #tpu.memory_space<vmem>>, vector<1x24xf32>
    %35 = vector.broadcast %34 : vector<1x24xf32> to vector<8x24xf32>
    %36 = arith.mulf %33, %35 : vector<8x24xf32>
    %c0_14 = arith.constant 0 : index
    %c0_15 = arith.constant 0 : index
    %37 = vector.load %arg4[%c0_14, %c0_15] : memref<24x64xf32, #tpu.memory_space<vmem>>, vector<24x64xf32>
    %cst_16 = arith.constant dense<0.000000e+00> : vector<8x64xf32>
    %38 = tpu.matmul %36, %37, %cst_16 {dimension_numbers = #tpu.dot_dimension_numbers<[1], [0], [0], [1], [0, 0, 1, 1], [], []>} : vector<8x24xf32>, vector<24x64xf32>, vector<8x64xf32> -> vector<8x64xf32>
    %39 = vector.extract_strided_slice %38 {offsets = [0, 0], sizes = [8, 32], strides = [1, 1]} : vector<8x64xf32> to vector<8x32xf32>
    %c0_17 = arith.constant 0 : index
    %c0_18 = arith.constant 0 : index
    %40 = vector.load %arg5[%c0_17, %c0_18] : memref<1x32xf32, #tpu.memory_space<vmem>>, vector<1x32xf32>
    %41 = vector.broadcast %40 : vector<1x32xf32> to vector<8x32xf32>
    %42 = arith.addf %39, %41 : vector<8x32xf32>
    %43 = arith.negf %42 : vector<8x32xf32>
    %44 = math.exp %43 : vector<8x32xf32>
    %cst_19 = arith.constant 1.000000e+00 : f32
    %45 = vector.broadcast %cst_19 : f32 to vector<8x32xf32>
    %46 = arith.addf %45, %44 : vector<8x32xf32>
    %47 = arith.divf %45, %46 : vector<8x32xf32>
    %cst_20 = arith.constant 0.000000e+00 : f32
    %48 = vector.broadcast %cst_20 : f32 to vector<8x32xf32>
    %49 = arith.addf %47, %48 : vector<8x32xf32>
    %50 = vector.extract_strided_slice %38 {offsets = [0, 32], sizes = [8, 32], strides = [1, 1]} : vector<8x64xf32> to vector<8x32xf32>
    %51 = arith.mulf %49, %17 : vector<8x32xf32>
    %52 = arith.addf %51, %50 : vector<8x32xf32>
    %c0_21 = arith.constant 0 : index
    %c0_22 = arith.constant 0 : index
    %53 = vector.load %arg6[%c0_21, %c0_22] : memref<8x32xf32, #tpu.memory_space<vmem>>, vector<8x32xf32>
    tpu.vector_store %arg6[%c0_21, %c0_22], %52 {strides = array<i32>} : memref<8x32xf32, #tpu.memory_space<vmem>>, vector<8x32xf32>,
    return
  }
  func.func @transform_0(%arg0: i32) -> (i32, i32) {
    %c0_i32 = arith.constant 0 : i32
    %c0_i32_0 = arith.constant 0 : i32
    return %arg0, %c0_i32 : i32, i32
  }
  func.func @transform_1(%arg0: i32) -> (i32, i32) {
    %c0_i32 = arith.constant 0 : i32
    %c0_i32_0 = arith.constant 0 : i32
    return %arg0, %c0_i32 : i32, i32
  }
  func.func @transform_2(%arg0: i32) -> (i32, i32) {
    %c0_i32 = arith.constant 0 : i32
    %c0_i32_0 = arith.constant 0 : i32
    %c0_i32_1 = arith.constant 0 : i32
    return %c0_i32, %c0_i32_0 : i32, i32
  }
  func.func @transform_3(%arg0: i32) -> (i32, i32) {
    %c0_i32 = arith.constant 0 : i32
    %c0_i32_0 = arith.constant 0 : i32
    %c0_i32_1 = arith.constant 0 : i32
    return %c0_i32, %c0_i32_0 : i32, i32
  }
  func.func @transform_4(%arg0: i32) -> (i32, i32) {
    %c0_i32 = arith.constant 0 : i32
    %c0_i32_0 = arith.constant 0 : i32
    %c0_i32_1 = arith.constant 0 : i32
    return %c0_i32, %c0_i32_0 : i32, i32
  }
  func.func @transform_5(%arg0: i32) -> (i32, i32) {
    %c0_i32 = arith.constant 0 : i32
    %c0_i32_0 = arith.constant 0 : i32
    return %arg0, %c0_i32 : i32, i32
  }
}

</mosaic_0001>

<llo_original>
// kernel: tpu_custom_call.1
$region0: #{tpu_custom_call.1}
  #allocation0 [shape = 'u32[]', space=smem, size = 0x4, offset = 0x4, fixed_abs, tag = 'smem constant byte address 0x4 - core index']
  #allocation1 [shape = 'u32[144,128]{1,0:T(1,128)}', space=vmem, size = 0x12000, scoped, tag = 'internal scratch']
  %s0 = inlined_call_operand.hbm [shape: f32[16,32], index: 0, kind: input, shape index: {}]
  %s1 = inlined_call_operand.hbm [shape: f32[16,24], index: 1, kind: input, shape index: {}]
  %s2 = inlined_call_operand.vmem [shape: f32[1,24], index: 2, kind: input, shape index: {}]
  %s3 = inlined_call_operand.hbm [shape: f32[24,64], index: 3, kind: input, shape index: {}]
  %s4 = inlined_call_operand.vmem [shape: f32[1,32], index: 4, kind: input, shape index: {}]
  %s5 = inlined_call_operand.hbm [shape: f32[16,32], index: 5, kind: output, shape index: {}]
  %s6 = sld [smem:[#allocation0]]
  $region65: #{tpu_custom_call.1} parent=0
    _
  %s8 = ssub.s32 1, %s6
  %s9 = scalar_select 0, %s8, %s6
  $region1: #{tpu_custom_call.1} parent=0
    #allocation2 [shape = 'u8[8192]{0}', space=vmem, size = 0x2000, scoped, tag = 'input window, operand 0']
    #allocation3 [shape = 's32[2]{0}', space=sflag, size = 0x8, scoped, tag = 'scoped memory for tpu_custom_call.1']
    #allocation4 [shape = 's32[2]{0}', space=sflag, size = 0x8, scoped, tag = 'scoped memory for tpu_custom_call.1']
    #allocation5 [shape = 'u8[8192]{0}', space=vmem, size = 0x2000, scoped, tag = 'input window, operand 1']
    #allocation6 [shape = 's32[2]{0}', space=sflag, size = 0x8, scoped, tag = 'scoped memory for tpu_custom_call.1']
    #allocation7 [shape = 'u8[12288]{0}', space=vmem, size = 0x3000, scoped, tag = 'input window, operand 3, single buffered']
    #allocation8 [shape = 'u8[8192]{0}', space=vmem, size = 0x2000, scoped, tag = 'output window, operand 0']
    %10 = vsyncpa [#allocation3], 0
    %s11 = scalar_lea.sflag [#allocation3], 1
    %12 = vsyncpa %s11, 0
    %13 = vsyncpa [#allocation6], 0
    %s14 = scalar_lea.sflag [#allocation6], 1
    %15 = vsyncpa %s14, 0
    %16 = vsyncpa [#allocation4], 0
    %s17 = scalar_lea.sflag [#allocation4], 1
    %18 = vsyncpa %s17, 0
    loop: start=0, step=1, limit=4
    $region2: #{tpu_custom_call.1} parent=1 // loop_pre_header
      _
    $region3: #{tpu_custom_call.1} parent=1 // loop_header
      %s20 = sphi 0, %s24
      %p21 = scmp.ge.s32.totalorder %s20, 4
      %s30 = sphi 0, %s32
      %s33 = sphi 0, %s30
      %s34 = sphi 0, %s33
      %s50 = sphi 0, %s34
      %s56 = sphi 0, %s58
      %s59 = sphi 0, %s56
      %s60 = sphi 0, %s59
      %s76 = sphi 0, %s60
      %s80 = sphi 0, %s80
      %s82 = sphi 0, %s80
      %s83 = sphi 0, %s82
      %s97 = sphi 0, %s83
      %s101 = sphi 0, %s101
      %s103 = sphi 0, %s101
      %s104 = sphi 0, %s103
      %s118 = sphi 0, %s104
      %s122 = sphi 0, %s122
      %s124 = sphi 0, %s122
      %s125 = sphi 0, %s124
      %s139 = sphi 0, %s125
      %s145 = sphi 0, %s147
      %s148 = sphi 0, %s145
      %s149 = sphi 0, %s148
      %s165 = sphi 0, %s149
    $region4: #{tpu_custom_call.1} parent=1 // loop_header_branch
      %23 = sbr.rel (%p21) target = $region8
    $region5: #{tpu_custom_call.1} parent=1 // loop_body
      %s25 = ssub.s32 %s20, 1
      %s26 = ssub.s32 %s20, 2
      %s27 = sadd.s32 %s20, 1
      %s28 = ssub.s32 %s20, %s27
      %p29 = scmp.eq.s32.totalorder %s28, 0
      %s31 = sadd.s32 %s30, 1
      %s32 = scalar_select %p29, %s30, %s31
      %p35 = pneg %p29
      %p36 = scmp.eq.s32.totalorder %s20, 1
      %p37 = por %p35, %p36
      %p38 = scmp.ne.s32.totalorder %s30, %s33
      %p39 = scmp.eq.s32.totalorder %s20, 0
      %p40 = por %p38, %p39
      %p41 = scmp.ne.s32.totalorder %s30, %s33
      %p42 = scmp.eq.s32.totalorder %s25, 1
      %p43 = por %p41, %p42
      %p44 = scmp.ne.s32.totalorder %s33, %s34
      %p45 = scmp.eq.s32.totalorder %s25, 0
      %p46 = por %p44, %p45
      %p47 = scmp.ne.s32.totalorder %s33, %s34
      %p48 = scmp.eq.s32.totalorder %s26, 1
      %p49 = por %p47, %p48
      %p51 = scmp.ne.s32.totalorder %s34, %s50
      %p52 = scmp.eq.s32.totalorder %s26, 0
      %p53 = por %p51, %p52
      %s54 = ssub.s32 %s20, %s27
      %p55 = scmp.eq.s32.totalorder %s54, 0
      %s57 = sadd.s32 %s56, 1
      %s58 = scalar_select %p55, %s56, %s57
      %p61 = pneg %p55
      %p62 = scmp.eq.s32.totalorder %s20, 1
      %p63 = por %p61, %p62
      %p64 = scmp.ne.s32.totalorder %s56, %s59
      %p65 = scmp.eq.s32.totalorder %s20, 0
      %p66 = por %p64, %p65
      %p67 = scmp.ne.s32.totalorder %s56, %s59
      %p68 = scmp.eq.s32.totalorder %s25, 1
      %p69 = por %p67, %p68
      %p70 = scmp.ne.s32.totalorder %s59, %s60
      %p71 = scmp.eq.s32.totalorder %s25, 0
      %p72 = por %p70, %p71
      %p73 = scmp.ne.s32.totalorder %s59, %s60
      %p74 = scmp.eq.s32.totalorder %s26, 1
      %p75 = por %p73, %p74
      %p77 = scmp.ne.s32.totalorder %s60, %s76
      %p78 = scmp.eq.s32.totalorder %s26, 0
      %p79 = por %p77, %p78
      %s81 = sadd.s32 %s80, 1
      %p84 = scmp.eq.s32.totalorder %s20, 1
      %p85 = scmp.ne.s32.totalorder %s80, %s82
      %p86 = scmp.eq.s32.totalorder %s20, 0
      %p87 = por %p85, %p86
      %p88 = scmp.ne.s32.totalorder %s80, %s82
      %p89 = scmp.eq.s32.totalorder %s25, 1
      %p90 = por %p88, %p89
      %p91 = scmp.ne.s32.totalorder %s82, %s83
      %p92 = scmp.eq.s32.totalorder %s25, 0
      %p93 = por %p91, %p92
      %p94 = scmp.ne.s32.totalorder %s82, %s83
      %p95 = scmp.eq.s32.totalorder %s26, 1
      %p96 = por %p94, %p95
      %p98 = scmp.ne.s32.totalorder %s83, %s97
      %p99 = scmp.eq.s32.totalorder %s26, 0
      %p100 = por %p98, %p99
      %s102 = sadd.s32 %s101, 1
      %p105 = scmp.eq.s32.totalorder %s20, 1
      %p106 = scmp.ne.s32.totalorder %s101, %s103
      %p107 = scmp.eq.s32.totalorder %s20, 0
      %p108 = por %p106, %p107
      %p109 = scmp.ne.s32.totalorder %s101, %s103
      %p110 = scmp.eq.s32.totalorder %s25, 1
      %p111 = por %p109, %p110
      %p112 = scmp.ne.s32.totalorder %s103, %s104
      %p113 = scmp.eq.s32.totalorder %s25, 0
      %p114 = por %p112, %p113
      %p115 = scmp.ne.s32.totalorder %s103, %s104
      %p116 = scmp.eq.s32.totalorder %s26, 1
      %p117 = por %p115, %p116
      %p119 = scmp.ne.s32.totalorder %s104, %s118
      %p120 = scmp.eq.s32.totalorder %s26, 0
      %p121 = por %p119, %p120
      %s123 = sadd.s32 %s122, 1
      %p126 = scmp.eq.s32.totalorder %s20, 1
      %p127 = scmp.ne.s32.totalorder %s122, %s124
      %p128 = scmp.eq.s32.totalorder %s20, 0
      %p129 = por %p127, %p128
      %p130 = scmp.ne.s32.totalorder %s122, %s124
      %p131 = scmp.eq.s32.totalorder %s25, 1
      %p132 = por %p130, %p131
      %p133 = scmp.ne.s32.totalorder %s124, %s125
      %p134 = scmp.eq.s32.totalorder %s25, 0
      %p135 = por %p133, %p134
      %p136 = scmp.ne.s32.totalorder %s124, %s125
      %p137 = scmp.eq.s32.totalorder %s26, 1
      %p138 = por %p136, %p137
      %p140 = scmp.ne.s32.totalorder %s125, %s139
      %p141 = scmp.eq.s32.totalorder %s26, 0
      %p142 = por %p140, %p141
      %s143 = ssub.s32 %s20, %s27
      %p144 = scmp.eq.s32.totalorder %s143, 0
      %s146 = sadd.s32 %s145, 1
      %s147 = scalar_select %p144, %s145, %s146
      %p150 = pneg %p144
      %p151 = scmp.eq.s32.totalorder %s20, 1
      %p152 = por %p150, %p151
      %p153 = scmp.ne.s32.totalorder %s145, %s148
      %p154 = scmp.eq.s32.totalorder %s20, 0
      %p155 = por %p153, %p154
      %p156 = scmp.ne.s32.totalorder %s145, %s148
      %p157 = scmp.eq.s32.totalorder %s25, 1
      %p158 = por %p156, %p157
      %p159 = scmp.ne.s32.totalorder %s148, %s149
      %p160 = scmp.eq.s32.totalorder %s25, 0
      %p161 = por %p159, %p160
      %p162 = scmp.ne.s32.totalorder %s148, %s149
      %p163 = scmp.eq.s32.totalorder %s26, 1
      %p164 = por %p162, %p163
      %p166 = scmp.ne.s32.totalorder %s149, %s165
      %p167 = scmp.eq.s32.totalorder %s26, 0
      %p168 = por %p166, %p167
      %p169 = scmp.le.s32.totalorder 1, %s20
      %p170 = scmp.lt.s32.totalorder %s20, 3
      %p171 = pnand %p169, %p170
      %p172 = pneg %p171
      // Predicated region
      $region9: #{tpu_custom_call.1} parent=5 // pred_check
        _
      $region10: #{tpu_custom_call.1} parent=5 // pred_check_branch
        %174 = sbr.rel (%p171) target = $region12
      $region11: #{tpu_custom_call.1} parent=5 // pred_region
        %s175 = ssub.s32 %s20, 1
        // Predicated region
        $region13: #{tpu_custom_call.1} parent=11 // pred_check
          %p176 = pneg %p93
        $region14: #{tpu_custom_call.1} parent=11 // pred_check_branch
          %178 = sbr.rel (%p176) target = $region16
        $region15: #{tpu_custom_call.1} parent=11 // pred_region
          _
        $region16: #{tpu_custom_call.1} parent=11 // pred_fallthru
          _
        // Predicated region
        $region17: #{tpu_custom_call.1} parent=11 // pred_check
          %p179 = pneg %p114
        $region18: #{tpu_custom_call.1} parent=11 // pred_check_branch
          %181 = sbr.rel (%p179) target = $region20
        $region19: #{tpu_custom_call.1} parent=11 // pred_region
          %s183 = ssub.s32 384, 384
          %184 = vsyncadd [#allocation6], %s183
          %s185 = sshll.u32 [#allocation7], 4
          %s186 = int_to_ptr.vmem [resolvable:$true] %s185
          %191 = dma.hbm_to_vmem [thread:$0]  %s3, 384, %s186, [#allocation6], 128, 128, 8
        $region20: #{tpu_custom_call.1} parent=11 // pred_fallthru
          _
        // Predicated region
        $region21: #{tpu_custom_call.1} parent=11 // pred_check
          %p192 = pneg %p135
        $region22: #{tpu_custom_call.1} parent=11 // pred_check_branch
          %194 = sbr.rel (%p192) target = $region24
        $region23: #{tpu_custom_call.1} parent=11 // pred_region
          _
        $region24: #{tpu_custom_call.1} parent=11 // pred_fallthru
          _
      $region12: #{tpu_custom_call.1} parent=5 // pred_fallthru
        _
      %p195 = scmp.lt.s32.totalorder %s20, 2
      // Predicated region
      $region25: #{tpu_custom_call.1} parent=5 // pred_check
        %p196 = pneg %p195
      $region26: #{tpu_custom_call.1} parent=5 // pred_check_branch
        %198 = sbr.rel (%p196) target = $region28
      $region27: #{tpu_custom_call.1} parent=5 // pred_region
        // Predicated region
        $region29: #{tpu_custom_call.1} parent=27 // pred_check
          %p199 = pneg %p40
        $region30: #{tpu_custom_call.1} parent=27 // pred_check_branch
          %201 = sbr.rel (%p199) target = $region32
        $region31: #{tpu_custom_call.1} parent=27 // pred_region
          %s202 = sand.u32 %s30, 1
          %s203 = scalar_lea.sflag [#allocation3], %s202
          %s204 = sand.u32 %s30, 1
          %s205 = smul.addr %s204, 8
          %s206 = scalar_lea.vmem [#allocation2], %s205
          %s208 = ssub.s32 128, 128
          %209 = vsyncadd %s203, %s208
          %s210 = smul.addr %s20, 128
          %s211 = scalar_lea.hbm %s0, %s210
          %s213 = sshll.u32 %s206, 4
          %s214 = int_to_ptr.vmem [resolvable:$true] %s213
          %216 = dma.hbm_to_vmem [thread:$0]  %s211, 128, %s214, %s203
        $region32: #{tpu_custom_call.1} parent=27 // pred_fallthru
          _
        // Predicated region
        $region33: #{tpu_custom_call.1} parent=27 // pred_check
          %p217 = pneg %p66
        $region34: #{tpu_custom_call.1} parent=27 // pred_check_branch
          %219 = sbr.rel (%p217) target = $region36
        $region35: #{tpu_custom_call.1} parent=27 // pred_region
          %s220 = sand.u32 %s20, 1
          %s221 = scalar_lea.sflag [#allocation6], %s220
          %s222 = sand.u32 %s56, 1
          %s223 = smul.addr %s222, 8
          %s224 = scalar_lea.vmem [#allocation5], %s223
          %s226 = ssub.s32 128, 128
          %227 = vsyncadd %s221, %s226
          %s228 = smul.addr %s20, 128
          %s229 = scalar_lea.hbm %s1, %s228
          %s231 = sshll.u32 %s224, 4
          %s232 = int_to_ptr.vmem [resolvable:$true] %s231
          %234 = dma.hbm_to_vmem [thread:$0]  %s229, 128, %s232, %s221
        $region36: #{tpu_custom_call.1} parent=27 // pred_fallthru
          _
      $region28: #{tpu_custom_call.1} parent=5 // pred_fallthru
        _
      %p235 = scmp.le.s32.totalorder 1, %s20
      %p236 = scmp.lt.s32.totalorder %s20, 3
      %p237 = pnand %p235, %p236
      %p238 = pneg %p237
      // Predicated region
      $region37: #{tpu_custom_call.1} parent=5 // pred_check
        _
      $region38: #{tpu_custom_call.1} parent=5 // pred_check_branch
        %240 = sbr.rel (%p237) target = $region40
      $region39: #{tpu_custom_call.1} parent=5 // pred_region
        %s241 = ssub.s32 %s20, 1
        %s242 = sand.u32 %s33, 1
        %s243 = scalar_lea.sflag [#allocation3], %s242
        %s244 = sand.u32 %s33, 1
        %s245 = smul.addr %s244, 8
        %s246 = scalar_lea.vmem [#allocation2], %s245
        // Predicated region
        $region41: #{tpu_custom_call.1} parent=39 // pred_check
          %p247 = pneg %p46
        $region42: #{tpu_custom_call.1} parent=39 // pred_check_branch
          %249 = sbr.rel (%p247) target = $region44
        $region43: #{tpu_custom_call.1} parent=39 // pred_region
          %250 = dma.done %s243, 128
        $region44: #{tpu_custom_call.1} parent=39 // pred_fallthru
          _
        %s251 = sand.u32 %s25, 1
        %s252 = scalar_lea.sflag [#allocation6], %s251
        %s253 = sand.u32 %s59, 1
        %s254 = smul.addr %s253, 8
        %s255 = scalar_lea.vmem [#allocation5], %s254
        // Predicated region
        $region45: #{tpu_custom_call.1} parent=39 // pred_check
          %p256 = pneg %p72
        $region46: #{tpu_custom_call.1} parent=39 // pred_check_branch
          %258 = sbr.rel (%p256) target = $region48
        $region47: #{tpu_custom_call.1} parent=39 // pred_region
          %259 = dma.done %s252, 128
        $region48: #{tpu_custom_call.1} parent=39 // pred_fallthru
          _
        // Predicated region
        $region49: #{tpu_custom_call.1} parent=39 // pred_check
          %p260 = pneg %p114
        $region50: #{tpu_custom_call.1} parent=39 // pred_check_branch
          %262 = sbr.rel (%p260) target = $region52
        $region51: #{tpu_custom_call.1} parent=39 // pred_region
          %263 = dma.done [#allocation6], 384
        $region52: #{tpu_custom_call.1} parent=39 // pred_fallthru
          _
        %s264 = sand.u32 %s33, 1
        %s265 = scalar_lea.sflag [#allocation3], %s264
        %s266 = sand.u32 %s33, 1
        %s267 = smul.addr %s266, 8
        %s268 = scalar_lea.vmem [#allocation2], %s267
        %p269 = pneg %p46
        %p270 = pneg %p43
        %s271 = sand.u32 %s25, 1
        %s272 = scalar_lea.sflag [#allocation6], %s271
        %s273 = sand.u32 %s59, 1
        %s274 = smul.addr %s273, 8
        %s275 = scalar_lea.vmem [#allocation5], %s274
        %p276 = pneg %p72
        %p277 = pneg %p69
        %p278 = pneg %p93
        %p279 = pneg %p90
        %p280 = pneg %p114
        %p281 = pneg %p111
        %p282 = pneg %p135
        %p283 = pneg %p132
        %p284 = pneg %p161
        %p285 = pneg %p158
        %s286 = sand.u32 %s148, 1
        %s287 = scalar_lea.sflag [#allocation4], %s286
        %s288 = sand.u32 %s148, 1
        %s289 = smul.addr %s288, 8
        %s290 = scalar_lea.vmem [#allocation8], %s289
        %v291 = vld [vmem:[%s246] sm:$0xff]
        %v292 = vld [vmem:[%s255] sm:$0xff]
        %vm293 = vcmask 261120
        %v294 = vsel %vm293, %v291, 0.0
        %295 = vadd.xlane.f32.xlu0 %v294
        %v296 = vpop.xlane.xlu0 %295
        %v297 = vmul.f32 %v296, 0.03125
        %v298 = vsub.f32 %v291, %v297
        %v299 = vmul.f32 %v298, %v298
        %v300 = vsel %vm293, %v299, 0.0
        %301 = vadd.xlane.f32.xlu0 %v300
        %v302 = vpop.xlane.xlu0 %301
        %v303 = vmul.f32 %v302, 0.03125
        %v304 = vadd.f32 %v303, 1e-05
        %v305 = vrsqrt.pop %v304
        %v306 = vmul.f32 %v298, %v305
        %vm307 = vcmask 195584
        %v308 = vsel %vm307, %v292, 0.0
        %309 = vadd.xlane.f32.xlu0 %v308
        %v310 = vpop.xlane.xlu0 %309
        %v311 = vmul.f32 %v310, 0.041666668
        %v312 = vsub.f32 %v292, %v311
        %v313 = vmul.f32 %v312, %v312
        %v314 = vsel %vm307, %v313, 0.0
        %315 = vadd.xlane.f32.xlu0 %v314
        %v316 = vpop.xlane.xlu0 %315
        %v317 = vmul.f32 %v316, 0.041666668
        %v318 = vadd.f32 %v317, 1e-05
        %v319 = vrsqrt.pop %v318
        %v320 = vmul.f32 %v312, %v319
        %v321 = vld [vmem:[%s2] sm:$0x1]
        %v323 = vlaneseq
        %v324 = vshrl.u32 %v323, 7
        %v325 = vsub.s32 0, %v324
        %v326 = vrot.slane %v321, %v325
        %v328 = vmul.f32 %v320, %v326
        %v329 = vld [vmem:[#allocation7] sm:$0xff]
        %v330 = vld [vmem:[#allocation7 + $0x8] sm:$0xff]
        %v331 = vld [vmem:[#allocation7 + $0x10] sm:$0xff]
        %v333 = vsel %vm307, %v328, 0
        %335 = vmatprep.subr.mxu0 0.0
        %336 = vmatpush1.msra.mxu0 %v329
        %337 = vmatprep.subr.mxu0 0.0
        %338 = vmatpush1.msra.mxu0 %v330
        %339 = vmatprep.subr.mxu0 0.0
        %340 = vmatpush1.msra.mxu0 %v331
        %341 = vmatprep.subr.mxu0 0.0
        %342 = vmatpush1.msra.mxu0 0.0
        %343 = vmatprep.subr.mxu0 0.0
        %344 = vmatpush1.msra.mxu0 0.0
        %345 = vmatprep.subr.mxu0 0.0
        %346 = vmatpush1.msra.mxu0 0.0
        %347 = vmatprep.subr.mxu0 0.0
        %348 = vmatpush1.msra.mxu0 0.0
        %349 = vmatprep.subr.mxu0 0.0
        %350 = vmatpush1.msra.mxu0 0.0
        %351 = vmatprep.subr.mxu0 0.0
        %352 = vmatpush1.msra.mxu0 0.0
        %353 = vmatprep.subr.mxu0 0.0
        %354 = vmatpush1.msra.mxu0 0.0
        %355 = vmatprep.subr.mxu0 0.0
        %356 = vmatpush1.msra.mxu0 0.0
        %357 = vmatprep.subr.mxu0 0.0
        %358 = vmatpush1.msra.mxu0 0.0
        %359 = vmatprep.subr.mxu0 0.0
        %360 = vmatpush1.msra.mxu0 0.0
        %361 = vmatprep.subr.mxu0 0.0
        %362 = vmatpush1.msra.mxu0 0.0
        %363 = vmatprep.subr.mxu0 0.0
        %364 = vmatpush1.msra.mxu0 0.0
        %365 = vmatprep.subr.mxu0 0.0
        %366 = vmatpush1.msra.mxu0 0.0
        %367 = vmatprep.subr.mxu0 0.0
        %368 = vmatpush1.msra.mxu0 0.0
        %369 = vmatprep.subr.mxu0 0.0
        %370 = vmatpush1.msra.mxu0 0.0
        %371 = vmatprep.subr.mxu0 0.0
        %372 = vmatpush1.msra.mxu0 0.0
        %373 = vmatprep.subr.mxu0 0.0
        %374 = vmatpush1.msra.mxu0 0.0
        %375 = vmatprep.subr.mxu0 0.0
        %376 = vmatpush1.msra.mxu0 0.0
        %377 = vmatprep.subr.mxu0 0.0
        %378 = vmatpush1.msra.mxu0 0.0
        %379 = vmatprep.subr.mxu0 0.0
        %380 = vmatpush1.msra.mxu0 0.0
        %381 = vmatprep.subr.mxu0 0.0
        %382 = vmatpush1.msra.mxu0 0.0
        %383 = vmatprep.subr.mxu0 0.0
        %384 = vmatpush1.msra.mxu0 0.0
        %385 = vmatprep.subr.mxu0 0.0
        %386 = vmatpush1.msra.mxu0 0.0
        %387 = vmatprep.subr.mxu0 0.0
        %388 = vmatpush1.msra.mxu0 0.0
        %389 = vmatprep.subr.mxu0 0.0
        %390 = vmatpush1.msra.mxu0 0.0
        %391 = vmatprep.subr.mxu0 0.0
        %392 = vmatpush1.msra.mxu0 0.0
        %393 = vmatprep.subr.mxu0 0.0
        %394 = vmatpush1.msra.mxu0 0.0
        %395 = vmatprep.subr.mxu0 0.0
        %396 = vmatpush1.msra.mxu0 0.0
        %397 = vmatprep.subr.mxu0 0.0
        %398 = vmatpush1.msra.mxu0 0.0
        %399 = vmatprep.mubr.f32.mxu0 0.0
        %400 = vmatmul.mubr.f32.gmra.mrb[0].mxu0 %v333
        %v401 = vpop.f32.mrb[0].mxu0
        %v402 = vadd.f32 0.0, %v401
        %v403 = vpop.f32.mrb[0].mxu0
        %404 = vdwg.mxu0
        %v405 = vld [vmem:[%s4] sm:$0x1]
        %v407 = vlaneseq
        %v408 = vshrl.u32 %v407, 7
        %v409 = vsub.s32 0, %v408
        %v410 = vrot.slane %v405, %v409
        %v412 = vadd.f32 %v402, %v410
        %v413 = vxor.u32 %v412, 2147483648
        %v414 = vmul.f32 %v413, 1.442695
        %v415 = vpow.pop %v414
        %v416 = vadd.f32 %v415, 1.0
        %v417 = vrcp.pop %v416
        %v418 = vmul.f32 1.0, %v417
        %v419 = vadd.f32 %v418, 0.0
        %v420 = vmul.f32 %v419, %v306
        %422 = vrot.lane.b32.xlu0 %v402, 96
        %v423 = vpop.permute.xlu0 %422
        %v425 = vadd.f32 %v420, %v423
        %426 = vst.msk [vmem:[%s290] sm:$0xff] %vm293, %v425
        %s427 = sand.u32 %s148, 1
        %s428 = scalar_lea.sflag [#allocation4], %s427
        %s429 = sand.u32 %s148, 1
        %s430 = smul.addr %s429, 8
        %s431 = scalar_lea.vmem [#allocation8], %s430
        // Predicated region
        $region53: #{tpu_custom_call.1} parent=39 // pred_check
          %p432 = pneg %p158
        $region54: #{tpu_custom_call.1} parent=39 // pred_check_branch
          %434 = sbr.rel (%p432) target = $region56
        $region55: #{tpu_custom_call.1} parent=39 // pred_region
          %s436 = ssub.s32 128, 128
          %437 = vsyncadd %s428, %s436
          %s438 = smul.addr %s25, 128
          %s439 = scalar_lea.hbm %s5, %s438
          %s441 = sshll.u32 %s431, 4
          %s442 = int_to_ptr.vmem [resolvable:$true] %s441
          %444 = dma.vmem_to_hbm [thread:$0]  %s442, 128, %s439, %s428
        $region56: #{tpu_custom_call.1} parent=39 // pred_fallthru
          _
      $region40: #{tpu_custom_call.1} parent=5 // pred_fallthru
        _
      %p445 = scmp.le.s32.totalorder 2, %s20
      // Predicated region
      $region57: #{tpu_custom_call.1} parent=5 // pred_check
        %p446 = pneg %p445
      $region58: #{tpu_custom_call.1} parent=5 // pred_check_branch
        %448 = sbr.rel (%p446) target = $region60
      $region59: #{tpu_custom_call.1} parent=5 // pred_region
        %s449 = ssub.s32 %s20, 2
        // Predicated region
        $region61: #{tpu_custom_call.1} parent=59 // pred_check
          %p450 = pneg %p164
        $region62: #{tpu_custom_call.1} parent=59 // pred_check_branch
          %452 = sbr.rel (%p450) target = $region64
        $region63: #{tpu_custom_call.1} parent=59 // pred_region
          %s453 = sand.u32 %s149, 1
          %s454 = scalar_lea.sflag [#allocation4], %s453
          %s455 = sand.u32 %s149, 1
          %s456 = smul.addr %s455, 8
          %s457 = scalar_lea.vmem [#allocation8], %s456
          %458 = dma.done %s454, 128
        $region64: #{tpu_custom_call.1} parent=59 // pred_fallthru
          _
      $region60: #{tpu_custom_call.1} parent=5 // pred_fallthru
        _
    $region6: #{tpu_custom_call.1} parent=1 // loop_footer
      %s24 = sadd.s32 1, %s20
    $region7: #{tpu_custom_call.1} parent=1 // loop_footer_branch
      %19 = sbr.rel target = $region3
    $region8: #{tpu_custom_call.1} parent=1 // loop_exit
      _
    %459 = vsyncpa [#allocation3], 1
    %s460 = scalar_lea.sflag [#allocation3], 1
    %461 = vsyncpa %s460, 1
    %462 = vsyncpa [#allocation6], 1
    %s463 = scalar_lea.sflag [#allocation6], 1
    %464 = vsyncpa %s463, 1
    %465 = vsyncpa [#allocation4], 1
    %s466 = scalar_lea.sflag [#allocation4], 1
    %467 = vsyncpa %s466, 1

// kernel: tpu_custom_call.1
$region0: #{tpu_custom_call.1}
  #allocation0 [shape = 'u32[]', space=smem, size = 0x4, offset = 0x4, fixed_abs, tag = 'smem constant byte address 0x4 - core index']
  #allocation1 [shape = 'u32[144,128]{1,0:T(1,128)}', space=vmem, size = 0x12000, scoped, tag = 'internal scratch']
  %s0 = inlined_call_operand.hbm [shape: f32[16,32], index: 0, kind: input, shape index: {}]
  %s1 = inlined_call_operand.hbm [shape: f32[16,24], index: 1, kind: input, shape index: {}]
  %s2 = inlined_call_operand.vmem [shape: f32[1,24], index: 2, kind: input, shape index: {}]
  %s3 = inlined_call_operand.hbm [shape: f32[24,64], index: 3, kind: input, shape index: {}]
  %s4 = inlined_call_operand.vmem [shape: f32[1,32], index: 4, kind: input, shape index: {}]
  %s5 = inlined_call_operand.hbm [shape: f32[16,32], index: 5, kind: output, shape index: {}]
  %s6 = sld [smem:[#allocation0]]
  $region65: #{tpu_custom_call.1} parent=0
    _
  %s8 = ssub.s32 1, %s6
  %s9 = scalar_select 0, %s8, %s6
  $region1: #{tpu_custom_call.1} parent=0
    #allocation2 [shape = 'u8[8192]{0}', space=vmem, size = 0x2000, scoped, tag = 'input window, operand 0']
    #allocation3 [shape = 's32[2]{0}', space=sflag, size = 0x8, scoped, tag = 'scoped memory for tpu_custom_call.1']
    #allocation4 [shape = 's32[2]{0}', space=sflag, size = 0x8, scoped, tag = 'scoped memory for tpu_custom_call.1']
    #allocation5 [shape = 'u8[8192]{0}', space=vmem, size = 0x2000, scoped, tag = 'input window, operand 1']
    #allocation6 [shape = 's32[2]{0}', space=sflag, size = 0x8, scoped, tag = 'scoped memory for tpu_custom_call.1']
    #allocation7 [shape = 'u8[12288]{0}', space=vmem, size = 0x3000, scoped, tag = 'input window, operand 3, single buffered']
    #allocation8 [shape = 'u8[8192]{0}', space=vmem, size = 0x2000, scoped, tag = 'output window, operand 0']
    %10 = vsyncpa [#allocation3], 0
    %s11 = scalar_lea.sflag [#allocation3], 1
    %12 = vsyncpa %s11, 0
    %13 = vsyncpa [#allocation6], 0
    %s14 = scalar_lea.sflag [#allocation6], 1
    %15 = vsyncpa %s14, 0
    %16 = vsyncpa [#allocation4], 0
    %s17 = scalar_lea.sflag [#allocation4], 1
    %18 = vsyncpa %s17, 0
    loop: start=0, step=1, limit=4
    $region2: #{tpu_custom_call.1} parent=1 // loop_pre_header
      _
    $region3: #{tpu_custom_call.1} parent=1 // loop_header
      %s20 = sphi 0, %s24
      %p21 = scmp.ge.s32.totalorder %s20, 4
      %s30 = sphi 0, %s32
      %s33 = sphi 0, %s30
      %s34 = sphi 0, %s33
      %s50 = sphi 0, %s34
      %s56 = sphi 0, %s58
      %s59 = sphi 0, %s56
      %s60 = sphi 0, %s59
      %s76 = sphi 0, %s60
      %s80 = sphi 0, %s80
      %s82 = sphi 0, %s80
      %s83 = sphi 0, %s82
      %s97 = sphi 0, %s83
      %s101 = sphi 0, %s101
      %s103 = sphi 0, %s101
      %s104 = sphi 0, %s103
      %s118 = sphi 0, %s104
      %s122 = sphi 0, %s122
      %s124 = sphi 0, %s122
      %s125 = sphi 0, %s124
      %s139 = sphi 0, %s125
      %s145 = sphi 0, %s147
      %s148 = sphi 0, %s145
      %s149 = sphi 0, %s148
      %s165 = sphi 0, %s149
    $region4: #{tpu_custom_call.1} parent=1 // loop_header_branch
      %23 = sbr.rel (%p21) target = $region8
    $region5: #{tpu_custom_call.1} parent=1 // loop_body
      %s25 = ssub.s32 %s20, 1
      %s26 = ssub.s32 %s20, 2
      %s27 = sadd.s32 %s20, 1
      %s28 = ssub.s32 %s20, %s27
      %p29 = scmp.eq.s32.totalorder %s28, 0
      %s31 = sadd.s32 %s30, 1
      %s32 = scalar_select %p29, %s30, %s31
      %p35 = pneg %p29
      %p36 = scmp.eq.s32.totalorder %s20, 1
      %p37 = por %p35, %p36
      %p38 = scmp.ne.s32.totalorder %s30, %s33
      %p39 = scmp.eq.s32.totalorder %s20, 0
      %p40 = por %p38, %p39
      %p41 = scmp.ne.s32.totalorder %s30, %s33
      %p42 = scmp.eq.s32.totalorder %s25, 1
      %p43 = por %p41, %p42
      %p44 = scmp.ne.s32.totalorder %s33, %s34
      %p45 = scmp.eq.s32.totalorder %s25, 0
      %p46 = por %p44, %p45
      %p47 = scmp.ne.s32.totalorder %s33, %s34
      %p48 = scmp.eq.s32.totalorder %s26, 1
      %p49 = por %p47, %p48
      %p51 = scmp.ne.s32.totalorder %s34, %s50
      %p52 = scmp.eq.s32.totalorder %s26, 0
      %p53 = por %p51, %p52
      %s54 = ssub.s32 %s20, %s27
      %p55 = scmp.eq.s32.totalorder %s54, 0
      %s57 = sadd.s32 %s56, 1
      %s58 = scalar_select %p55, %s56, %s57
      %p61 = pneg %p55
      %p62 = scmp.eq.s32.totalorder %s20, 1
      %p63 = por %p61, %p62
      %p64 = scmp.ne.s32.totalorder %s56, %s59
      %p65 = scmp.eq.s32.totalorder %s20, 0
      %p66 = por %p64, %p65
      %p67 = scmp.ne.s32.totalorder %s56, %s59
      %p68 = scmp.eq.s32.totalorder %s25, 1
      %p69 = por %p67, %p68
      %p70 = scmp.ne.s32.totalorder %s59, %s60
      %p71 = scmp.eq.s32.totalorder %s25, 0
      %p72 = por %p70, %p71
      %p73 = scmp.ne.s32.totalorder %s59, %s60
      %p74 = scmp.eq.s32.totalorder %s26, 1
      %p75 = por %p73, %p74
      %p77 = scmp.ne.s32.totalorder %s60, %s76
      %p78 = scmp.eq.s32.totalorder %s26, 0
      %p79 = por %p77, %p78
      %s81 = sadd.s32 %s80, 1
      %p84 = scmp.eq.s32.totalorder %s20, 1
      %p85 = scmp.ne.s32.totalorder %s80, %s82
      %p86 = scmp.eq.s32.totalorder %s20, 0
      %p87 = por %p85, %p86
      %p88 = scmp.ne.s32.totalorder %s80, %s82
      %p89 = scmp.eq.s32.totalorder %s25, 1
      %p90 = por %p88, %p89
      %p91 = scmp.ne.s32.totalorder %s82, %s83
      %p92 = scmp.eq.s32.totalorder %s25, 0
      %p93 = por %p91, %p92
      %p94 = scmp.ne.s32.totalorder %s82, %s83
      %p95 = scmp.eq.s32.totalorder %s26, 1
      %p96 = por %p94, %p95
      %p98 = scmp.ne.s32.totalorder %s83, %s97
      %p99 = scmp.eq.s32.totalorder %s26, 0
      %p100 = por %p98, %p99
      %s102 = sadd.s32 %s101, 1
      %p105 = scmp.eq.s32.totalorder %s20, 1
      %p106 = scmp.ne.s32.totalorder %s101, %s103
      %p107 = scmp.eq.s32.totalorder %s20, 0
      %p108 = por %p106, %p107
      %p109 = scmp.ne.s32.totalorder %s101, %s103
      %p110 = scmp.eq.s32.totalorder %s25, 1
      %p111 = por %p109, %p110
      %p112 = scmp.ne.s32.totalorder %s103, %s104
      %p113 = scmp.eq.s32.totalorder %s25, 0
      %p114 = por %p112, %p113
      %p115 = scmp.ne.s32.totalorder %s103, %s104
      %p116 = scmp.eq.s32.totalorder %s26, 1
      %p117 = por %p115, %p116
      %p119 = scmp.ne.s32.totalorder %s104, %s118
      %p120 = scmp.eq.s32.totalorder %s26, 0
      %p121 = por %p119, %p120
      %s123 = sadd.s32 %s122, 1
      %p126 = scmp.eq.s32.totalorder %s20, 1
      %p127 = scmp.ne.s32.totalorder %s122, %s124
      %p128 = scmp.eq.s32.totalorder %s20, 0
      %p129 = por %p127, %p128
      %p130 = scmp.ne.s32.totalorder %s122, %s124
      %p131 = scmp.eq.s32.totalorder %s25, 1
      %p132 = por %p130, %p131
      %p133 = scmp.ne.s32.totalorder %s124, %s125
      %p134 = scmp.eq.s32.totalorder %s25, 0
      %p135 = por %p133, %p134
      %p136 = scmp.ne.s32.totalorder %s124, %s125
      %p137 = scmp.eq.s32.totalorder %s26, 1
      %p138 = por %p136, %p137
      %p140 = scmp.ne.s32.totalorder %s125, %s139
      %p141 = scmp.eq.s32.totalorder %s26, 0
      %p142 = por %p140, %p141
      %s143 = ssub.s32 %s20, %s27
      %p144 = scmp.eq.s32.totalorder %s143, 0
      %s146 = sadd.s32 %s145, 1
      %s147 = scalar_select %p144, %s145, %s146
      %p150 = pneg %p144
      %p151 = scmp.eq.s32.totalorder %s20, 1
      %p152 = por %p150, %p151
      %p153 = scmp.ne.s32.totalorder %s145, %s148
      %p154 = scmp.eq.s32.totalorder %s20, 0
      %p155 = por %p153, %p154
      %p156 = scmp.ne.s32.totalorder %s145, %s148
      %p157 = scmp.eq.s32.totalorder %s25, 1
      %p158 = por %p156, %p157
      %p159 = scmp.ne.s32.totalorder %s148, %s149
      %p160 = scmp.eq.s32.totalorder %s25, 0
      %p161 = por %p159, %p160
      %p162 = scmp.ne.s32.totalorder %s148, %s149
      %p163 = scmp.eq.s32.totalorder %s26, 1
      %p164 = por %p162, %p163
      %p166 = scmp.ne.s32.totalorder %s149, %s165
      %p167 = scmp.eq.s32.totalorder %s26, 0
      %p168 = por %p166, %p167
      %p169 = scmp.le.s32.totalorder 1, %s20
      %p170 = scmp.lt.s32.totalorder %s20, 3
      %p171 = pnand %p169, %p170
      %p172 = pneg %p171
      // Predicated region
      $region9: #{tpu_custom_call.1} parent=5 // pred_check
        _
      $region10: #{tpu_custom_call.1} parent=5 // pred_check_branch
        %174 = sbr.rel (%p171) target = $region12
      $region11: #{tpu_custom_call.1} parent=5 // pred_region
        %s175 = ssub.s32 %s20, 1
        // Predicated region
        $region13: #{tpu_custom_call.1} parent=11 // pred_check
          %p176 = pneg %p93
        $region14: #{tpu_custom_call.1} parent=11 // pred_check_branch
          %178 = sbr.rel (%p176) target = $region16
        $region15: #{tpu_custom_call.1} parent=11 // pred_region
          _
        $region16: #{tpu_custom_call.1} parent=11 // pred_fallthru
          _
        // Predicated region
        $region17: #{tpu_custom_call.1} parent=11 // pred_check
          %p179 = pneg %p114
        $region18: #{tpu_custom_call.1} parent=11 // pred_check_branch
          %181 = sbr.rel (%p179) target = $region20
        $region19: #{tpu_custom_call.1} parent=11 // pred_region
          %s183 = ssub.s32 384, 384
          %184 = vsyncadd [#allocation6], %s183
          %s185 = sshll.u32 [#allocation7], 4
          %s186 = int_to_ptr.vmem [resolvable:$true] %s185
          %191 = dma.hbm_to_vmem [thread:$0]  %s3, 384, %s186, [#allocation6], 128, 128, 8
        $region20: #{tpu_custom_call.1} parent=11 // pred_fallthru
          _
        // Predicated region
        $region21: #{tpu_custom_call.1} parent=11 // pred_check
          %p192 = pneg %p135
        $region22: #{tpu_custom_call.1} parent=11 // pred_check_branch
          %194 = sbr.rel (%p192) target = $region24
        $region23: #{tpu_custom_call.1} parent=11 // pred_region
          _
        $region24: #{tpu_custom_call.1} parent=11 // pred_fallthru
          _
      $region12: #{tpu_custom_call.1} parent=5 // pred_fallthru
        _
      %p195 = scmp.lt.s32.totalorder %s20, 2
      // Predicated region
      $region25: #{tpu_custom_call.1} parent=5 // pred_check
        %p196 = pneg %p195
      $region26: #{tpu_custom_call.1} parent=5 // pred_check_branch
        %198 = sbr.rel (%p196) target = $region28
      $region27: #{tpu_custom_call.1} parent=5 // pred_region
        // Predicated region
        $region29: #{tpu_custom_call.1} parent=27 // pred_check
          %p199 = pneg %p40
        $region30: #{tpu_custom_call.1} parent=27 // pred_check_branch
          %201 = sbr.rel (%p199) target = $region32
        $region31: #{tpu_custom_call.1} parent=27 // pred_region
          %s202 = sand.u32 %s30, 1
          %s203 = scalar_lea.sflag [#allocation3], %s202
          %s204 = sand.u32 %s30, 1
          %s205 = smul.addr %s204, 8
          %s206 = scalar_lea.vmem [#allocation2], %s205
          %s208 = ssub.s32 128, 128
          %209 = vsyncadd %s203, %s208
          %s210 = smul.addr %s20, 128
          %s211 = scalar_lea.hbm %s0, %s210
          %s213 = sshll.u32 %s206, 4
          %s214 = int_to_ptr.vmem [resolvable:$true] %s213
          %216 = dma.hbm_to_vmem [thread:$0]  %s211, 128, %s214, %s203
        $region32: #{tpu_custom_call.1} parent=27 // pred_fallthru
          _
        // Predicated region
        $region33: #{tpu_custom_call.1} parent=27 // pred_check
          %p217 = pneg %p66
        $region34: #{tpu_custom_call.1} parent=27 // pred_check_branch
          %219 = sbr.rel (%p217) target = $region36
        $region35: #{tpu_custom_call.1} parent=27 // pred_region
          %s220 = sand.u32 %s20, 1
          %s221 = scalar_lea.sflag [#allocation6], %s220
          %s222 = sand.u32 %s56, 1
          %s223 = smul.addr %s222, 8
          %s224 = scalar_lea.vmem [#allocation5], %s223
          %s226 = ssub.s32 128, 128
          %227 = vsyncadd %s221, %s226
          %s228 = smul.addr %s20, 128
          %s229 = scalar_lea.hbm %s1, %s228
          %s231 = sshll.u32 %s224, 4
          %s232 = int_to_ptr.vmem [resolvable:$true] %s231
          %234 = dma.hbm_to_vmem [thread:$0]  %s229, 128, %s232, %s221
        $region36: #{tpu_custom_call.1} parent=27 // pred_fallthru
          _
      $region28: #{tpu_custom_call.1} parent=5 // pred_fallthru
        _
      %p235 = scmp.le.s32.totalorder 1, %s20
      %p236 = scmp.lt.s32.totalorder %s20, 3
      %p237 = pnand %p235, %p236
      %p238 = pneg %p237
      // Predicated region
      $region37: #{tpu_custom_call.1} parent=5 // pred_check
        _
      $region38: #{tpu_custom_call.1} parent=5 // pred_check_branch
        %240 = sbr.rel (%p237) target = $region40
      $region39: #{tpu_custom_call.1} parent=5 // pred_region
        %s241 = ssub.s32 %s20, 1
        %s242 = sand.u32 %s33, 1
        %s243 = scalar_lea.sflag [#allocation3], %s242
        %s244 = sand.u32 %s33, 1
        %s245 = smul.addr %s244, 8
        %s246 = scalar_lea.vmem [#allocation2], %s245
        // Predicated region
        $region41: #{tpu_custom_call.1} parent=39 // pred_check
          %p247 = pneg %p46
        $region42: #{tpu_custom_call.1} parent=39 // pred_check_branch
          %249 = sbr.rel (%p247) target = $region44
        $region43: #{tpu_custom_call.1} parent=39 // pred_region
          %250 = dma.done %s243, 128
        $region44: #{tpu_custom_call.1} parent=39 // pred_fallthru
          _
        %s251 = sand.u32 %s25, 1
        %s252 = scalar_lea.sflag [#allocation6], %s251
        %s253 = sand.u32 %s59, 1
        %s254 = smul.addr %s253, 8
        %s255 = scalar_lea.vmem [#allocation5], %s254
        // Predicated region
        $region45: #{tpu_custom_call.1} parent=39 // pred_check
          %p256 = pneg %p72
        $region46: #{tpu_custom_call.1} parent=39 // pred_check_branch
          %258 = sbr.rel (%p256) target = $region48
        $region47: #{tpu_custom_call.1} parent=39 // pred_region
          %259 = dma.done %s252, 128
        $region48: #{tpu_custom_call.1} parent=39 // pred_fallthru
          _
        // Predicated region
        $region49: #{tpu_custom_call.1} parent=39 // pred_check
          %p260 = pneg %p114
        $region50: #{tpu_custom_call.1} parent=39 // pred_check_branch
          %262 = sbr.rel (%p260) target = $region52
        $region51: #{tpu_custom_call.1} parent=39 // pred_region
          %263 = dma.done [#allocation6], 384
        $region52: #{tpu_custom_call.1} parent=39 // pred_fallthru
          _
        %s264 = sand.u32 %s33, 1
        %s265 = scalar_lea.sflag [#allocation3], %s264
        %s266 = sand.u32 %s33, 1
        %s267 = smul.addr %s266, 8
        %s268 = scalar_lea.vmem [#allocation2], %s267
        %p269 = pneg %p46
        %p270 = pneg %p43
        %s271 = sand.u32 %s25, 1
        %s272 = scalar_lea.sflag [#allocation6], %s271
        %s273 = sand.u32 %s59, 1
        %s274 = smul.addr %s273, 8
        %s275 = scalar_lea.vmem [#allocation5], %s274
        %p276 = pneg %p72
        %p277 = pneg %p69
        %p278 = pneg %p93
        %p279 = pneg %p90
        %p280 = pneg %p114
        %p281 = pneg %p111
        %p282 = pneg %p135
        %p283 = pneg %p132
        %p284 = pneg %p161
        %p285 = pneg %p158
        %s286 = sand.u32 %s148, 1
        %s287 = scalar_lea.sflag [#allocation4], %s286
        %s288 = sand.u32 %s148, 1
        %s289 = smul.addr %s288, 8
        %s290 = scalar_lea.vmem [#allocation8], %s289
        %v291 = vld [vmem:[%s246] sm:$0xff]
        %v292 = vld [vmem:[%s255] sm:$0xff]
        %vm293 = vcmask 261120
        %v294 = vsel %vm293, %v291, 0.0
        %295 = vadd.xlane.f32.xlu0 %v294
        %v296 = vpop.xlane.xlu0 %295
        %v297 = vmul.f32 %v296, 0.03125
        %v298 = vsub.f32 %v291, %v297
        %v299 = vmul.f32 %v298, %v298
        %v300 = vsel %vm293, %v299, 0.0
        %301 = vadd.xlane.f32.xlu0 %v300
        %v302 = vpop.xlane.xlu0 %301
        %v303 = vmul.f32 %v302, 0.03125
        %v304 = vadd.f32 %v303, 1e-05
        %v305 = vrsqrt.pop %v304
        %v306 = vmul.f32 %v298, %v305
        %vm307 = vcmask 195584
        %v308 = vsel %vm307, %v292, 0.0
        %309 = vadd.xlane.f32.xlu0 %v308
        %v310 = vpop.xlane.xlu0 %309
        %v311 = vmul.f32 %v310, 0.041666668
        %v312 = vsub.f32 %v292, %v311
        %v313 = vmul.f32 %v312, %v312
        %v314 = vsel %vm307, %v313, 0.0
        %315 = vadd.xlane.f32.xlu0 %v314
        %v316 = vpop.xlane.xlu0 %315
        %v317 = vmul.f32 %v316, 0.041666668
        %v318 = vadd.f32 %v317, 1e-05
        %v319 = vrsqrt.pop %v318
        %v320 = vmul.f32 %v312, %v319
        %v321 = vld [vmem:[%s2] sm:$0x1]
        %v323 = vlaneseq
        %v324 = vshrl.u32 %v323, 7
        %v325 = vsub.s32 0, %v324
        %v326 = vrot.slane %v321, %v325
        %v328 = vmul.f32 %v320, %v326
        %v329 = vld [vmem:[#allocation7] sm:$0xff]
        %v330 = vld [vmem:[#allocation7 + $0x8] sm:$0xff]
        %v331 = vld [vmem:[#allocation7 + $0x10] sm:$0xff]
        %v333 = vsel %vm307, %v328, 0
        %335 = vmatprep.subr.mxu0 0.0
        %336 = vmatpush1.msra.mxu0 %v329
        %337 = vmatprep.subr.mxu0 0.0
        %338 = vmatpush1.msra.mxu0 %v330
        %339 = vmatprep.subr.mxu0 0.0
        %340 = vmatpush1.msra.mxu0 %v331
        %341 = vmatprep.subr.mxu0 0.0
        %342 = vmatpush1.msra.mxu0 0.0
        %343 = vmatprep.subr.mxu0 0.0
        %344 = vmatpush1.msra.mxu0 0.0
        %345 = vmatprep.subr.mxu0 0.0
        %346 = vmatpush1.msra.mxu0 0.0
        %347 = vmatprep.subr.mxu0 0.0
        %348 = vmatpush1.msra.mxu0 0.0
        %349 = vmatprep.subr.mxu0 0.0
        %350 = vmatpush1.msra.mxu0 0.0
        %351 = vmatprep.subr.mxu0 0.0
        %352 = vmatpush1.msra.mxu0 0.0
        %353 = vmatprep.subr.mxu0 0.0
        %354 = vmatpush1.msra.mxu0 0.0
        %355 = vmatprep.subr.mxu0 0.0
        %356 = vmatpush1.msra.mxu0 0.0
        %357 = vmatprep.subr.mxu0 0.0
        %358 = vmatpush1.msra.mxu0 0.0
        %359 = vmatprep.subr.mxu0 0.0
        %360 = vmatpush1.msra.mxu0 0.0
        %361 = vmatprep.subr.mxu0 0.0
        %362 = vmatpush1.msra.mxu0 0.0
        %363 = vmatprep.subr.mxu0 0.0
        %364 = vmatpush1.msra.mxu0 0.0
        %365 = vmatprep.subr.mxu0 0.0
        %366 = vmatpush1.msra.mxu0 0.0
        %367 = vmatprep.subr.mxu0 0.0
        %368 = vmatpush1.msra.mxu0 0.0
        %369 = vmatprep.subr.mxu0 0.0
        %370 = vmatpush1.msra.mxu0 0.0
        %371 = vmatprep.subr.mxu0 0.0
        %372 = vmatpush1.msra.mxu0 0.0
        %373 = vmatprep.subr.mxu0 0.0
        %374 = vmatpush1.msra.mxu0 0.0
        %375 = vmatprep.subr.mxu0 0.0
        %376 = vmatpush1.msra.mxu0 0.0
        %377 = vmatprep.subr.mxu0 0.0
        %378 = vmatpush1.msra.mxu0 0.0
        %379 = vmatprep.subr.mxu0 0.0
        %380 = vmatpush1.msra.mxu0 0.0
        %381 = vmatprep.subr.mxu0 0.0
        %382 = vmatpush1.msra.mxu0 0.0
        %383 = vmatprep.subr.mxu0 0.0
        %384 = vmatpush1.msra.mxu0 0.0
        %385 = vmatprep.subr.mxu0 0.0
        %386 = vmatpush1.msra.mxu0 0.0
        %387 = vmatprep.subr.mxu0 0.0
        %388 = vmatpush1.msra.mxu0 0.0
        %389 = vmatprep.subr.mxu0 0.0
        %390 = vmatpush1.msra.mxu0 0.0
        %391 = vmatprep.subr.mxu0 0.0
        %392 = vmatpush1.msra.mxu0 0.0
        %393 = vmatprep.subr.mxu0 0.0
        %394 = vmatpush1.msra.mxu0 0.0
        %395 = vmatprep.subr.mxu0 0.0
        %396 = vmatpush1.msra.mxu0 0.0
        %397 = vmatprep.subr.mxu0 0.0
        %398 = vmatpush1.msra.mxu0 0.0
        %399 = vmatprep.mubr.f32.mxu0 0.0
        %400 = vmatmul.mubr.f32.gmra.mrb[0].mxu0 %v333
        %v401 = vpop.f32.mrb[0].mxu0
        %v402 = vadd.f32 0.0, %v401
        %v403 = vpop.f32.mrb[0].mxu0
        %404 = vdwg.mxu0
        %v405 = vld [vmem:[%s4] sm:$0x1]
        %v407 = vlaneseq
        %v408 = vshrl.u32 %v407, 7
        %v409 = vsub.s32 0, %v408
        %v410 = vrot.slane %v405, %v409
        %v412 = vadd.f32 %v402, %v410
        %v413 = vxor.u32 %v412, 2147483648
        %v414 = vmul.f32 %v413, 1.442695
        %v415 = vpow.pop %v414
        %v416 = vadd.f32 %v415, 1.0
        %v417 = vrcp.pop %v416
        %v418 = vmul.f32 1.0, %v417
        %v419 = vadd.f32 %v418, 0.0
        %v420 = vmul.f32 %v419, %v306
        %422 = vrot.lane.b32.xlu0 %v402, 96
        %v423 = vpop.permute.xlu0 %422
        %v425 = vadd.f32 %v420, %v423
        %426 = vst.msk [vmem:[%s290] sm:$0xff] %vm293, %v425
        %s427 = sand.u32 %s148, 1
        %s428 = scalar_lea.sflag [#allocation4], %s427
        %s429 = sand.u32 %s148, 1
        %s430 = smul.addr %s429, 8
        %s431 = scalar_lea.vmem [#allocation8], %s430
        // Predicated region
        $region53: #{tpu_custom_call.1} parent=39 // pred_check
          %p432 = pneg %p158
        $region54: #{tpu_custom_call.1} parent=39 // pred_check_branch
          %434 = sbr.rel (%p432) target = $region56
        $region55: #{tpu_custom_call.1} parent=39 // pred_region
          %s436 = ssub.s32 128, 128
          %437 = vsyncadd %s428, %s436
          %s438 = smul.addr %s25, 128
          %s439 = scalar_lea.hbm %s5, %s438
          %s441 = sshll.u32 %s431, 4
          %s442 = int_to_ptr.vmem [resolvable:$true] %s441
          %444 = dma.vmem_to_hbm [thread:$0]  %s442, 128, %s439, %s428
        $region56: #{tpu_custom_call.1} parent=39 // pred_fallthru
          _
      $region40: #{tpu_custom_call.1} parent=5 // pred_fallthru
        _
      %p445 = scmp.le.s32.totalorder 2, %s20
      // Predicated region
      $region57: #{tpu_custom_call.1} parent=5 // pred_check
        %p446 = pneg %p445
      $region58: #{tpu_custom_call.1} parent=5 // pred_check_branch
        %448 = sbr.rel (%p446) target = $region60
      $region59: #{tpu_custom_call.1} parent=5 // pred_region
        %s449 = ssub.s32 %s20, 2
        // Predicated region
        $region61: #{tpu_custom_call.1} parent=59 // pred_check
          %p450 = pneg %p164
        $region62: #{tpu_custom_call.1} parent=59 // pred_check_branch
          %452 = sbr.rel (%p450) target = $region64
        $region63: #{tpu_custom_call.1} parent=59 // pred_region
          %s453 = sand.u32 %s149, 1
          %s454 = scalar_lea.sflag [#allocation4], %s453
          %s455 = sand.u32 %s149, 1
          %s456 = smul.addr %s455, 8
          %s457 = scalar_lea.vmem [#allocation8], %s456
          %458 = dma.done %s454, 128
        $region64: #{tpu_custom_call.1} parent=59 // pred_fallthru
          _
      $region60: #{tpu_custom_call.1} parent=5 // pred_fallthru
        _
    $region6: #{tpu_custom_call.1} parent=1 // loop_footer
      %s24 = sadd.s32 1, %s20
    $region7: #{tpu_custom_call.1} parent=1 // loop_footer_branch
      %19 = sbr.rel target = $region3
    $region8: #{tpu_custom_call.1} parent=1 // loop_exit
      _
    %459 = vsyncpa [#allocation3], 1
    %s460 = scalar_lea.sflag [#allocation3], 1
    %461 = vsyncpa %s460, 1
    %462 = vsyncpa [#allocation6], 1
    %s463 = scalar_lea.sflag [#allocation6], 1
    %464 = vsyncpa %s463, 1
    %465 = vsyncpa [#allocation4], 1
    %s466 = scalar_lea.sflag [#allocation4], 1
    %467 = vsyncpa %s466, 1

</llo_original>
